<compile_context>
chip_gen: v5e
topology: v5e:2x2
jax: 0.10.0
libtpu: 0.0.40
codegen_flags: <defaults>
</compile_context>

<pallas_src>
import functools

import jax
import jax.numpy as jnp
from jax.experimental import pallas as pl
from jax.experimental.pallas import tpu as pltpu


def _cdiv(a, b):
    return (a + b - 1) // b


def _round_up(x, m):
    return _cdiv(x, m) * m


def _dice_kernel(preds_ref, tgt_ref, loss_ref,
                 inter_acc, sump_acc, sumt_acc, *,
                 smooth, mask_value, mask_one_hot, num_classes, s_tile):
    ni = pl.program_id(0)
    ti = pl.program_id(1)

    @pl.when(jnp.logical_and(ni == 0, ti == 0))
    def _init():
        inter_acc[...] = jnp.zeros_like(inter_acc)
        sump_acc[...] = jnp.zeros_like(sump_acc)
        sumt_acc[...] = jnp.zeros_like(sumt_acc)

    # (C, S, 128): classes on the leading (untiled) dim, pixels fill every
    # sublane/lane of every vreg.  Upcast per tile (HBM inputs may be bf16).
    logits = preds_ref[0].astype(jnp.float32)                 # (C, S, 128)
    m = jnp.max(logits, axis=0, keepdims=True)                # (1, S, 128)  VPU
    e = jnp.exp(logits - m)                                   # (C, S, 128)  EUP
    denom = jnp.sum(e, axis=0)                                # (S, 128)     VPU
    inv = pl.reciprocal(denom, approx=True)                   # (S, 128)     EUP

    tgt = tgt_ref[0, 0]                                       # (S, 128) int32

    valid = None
    if mask_value is not None:
        valid = (tgt != mask_value).astype(jnp.float32)       # (S, 128)
        inv = inv * valid     # fold ignore/pad mask into the per-pixel row

    sb = s_tile // 8

    def _part(x):  # (S, 128) -> (8, 128): cross-vreg VPU partial reduce
        return jnp.sum(x.reshape(sb, 8, 128), axis=0)

    for ci in range(num_classes):
        p = e[ci] * inv                                        # (S, 128)
        oh = (tgt == ci).astype(jnp.float32)                   # (S, 128)
        if mask_one_hot:  # only if ignore_index collides with a real class id
            oh = oh * valid
        inter_acc[ci] += _part(p * oh)
        sump_acc[ci] += _part(p)
        sumt_acc[ci] += _part(oh)

    @pl.when(jnp.logical_and(ni == pl.num_programs(0) - 1,
                             ti == pl.num_programs(1) - 1))
    def _finalize():
        # Tiny once-only epilogue: full reduces + exact division.
        dice_sum = 0.0
        for ci in range(num_classes):
            inter_c = jnp.sum(inter_acc[ci])
            union_c = jnp.sum(sump_acc[ci]) + jnp.sum(sumt_acc[ci])
            dice_sum = dice_sum + (2.0 * inter_c + smooth) / (union_c + smooth)
        loss_ref[...] = jnp.broadcast_to(1.0 - dice_sum / num_classes, (1, 1))


def dice_loss_pallas(preds, targets, *, smooth=1e-6, ignore_index=255,
                     vmem_budget_bytes=24 * 1024 * 1024, max_s_tile=2048):
    """preds: (N, C, H, W) float; targets: (N, H, W) int. Returns scalar loss."""
    n, c, h, w = preds.shape
    hw = h * w
    preds_bytes = jnp.dtype(preds.dtype).itemsize

    # --- pick the pixel tile from a VMEM budget -------------------------------
    # Per 128-pixel row: double-buffered preds + target blocks plus ~4C live
    # f32 temporaries (logits, e, per-class scratch) inside the kernel.
    per_s = 128 * (2 * c * preds_bytes + 2 * 4 + 4 * c * 4)
    s_total = _cdiv(hw, 128)
    s_tile = vmem_budget_bytes // per_s
    s_tile = min(s_tile, max_s_tile, _round_up(s_total, 8))
    s_tile = max(8, (s_tile // 8) * 8)        # multiple of 8 sublanes
    tile_hw = s_tile * 128                    # pixels per grid step

    # --- free reshapes; pad the pixel axis only when needed -------------------
    preds3 = preds.reshape(n, c, hw)
    tgt3 = targets.astype(jnp.int32).reshape(n, 1, hw)

    hw_pad = _round_up(hw, tile_hw)
    pad = hw_pad - hw
    mask_value = None if ignore_index is None else int(ignore_index)
    if pad:
        preds3 = jnp.pad(preds3, ((0, 0), (0, 0), (0, pad)))
        if mask_value is None:
            mask_value = c  # sentinel: never a real class id -> masks only the pad
        tgt3 = jnp.pad(tgt3, ((0, 0), (0, 0), (0, pad)),
                       constant_values=mask_value)

    # one_hot only needs re-masking if the ignore value collides with a class.
    mask_one_hot = (mask_value is not None) and (0 <= mask_value < c)

    preds4 = preds3.reshape(n, c, hw_pad // 128, 128)
    tgt4 = tgt3.reshape(n, 1, hw_pad // 128, 128)

    kernel = functools.partial(
        _dice_kernel,
        smooth=float(smooth),
        mask_value=mask_value,
        mask_one_hot=mask_one_hot,
        num_classes=c,
        s_tile=s_tile,
    )

    vmem_limit = int(min(48 * 1024 * 1024,
                         max(32 * 1024 * 1024, 2 * per_s * s_tile)))

    loss = pl.pallas_call(
        kernel,
        out_shape=jax.ShapeDtypeStruct((1, 1), jnp.float32),
        grid_spec=pltpu.PrefetchScalarGridSpec(
            num_scalar_prefetch=0,
            grid=(n, hw_pad // tile_hw),
            in_specs=[
                pl.BlockSpec((1, c, s_tile, 128), lambda ni, ti: (ni, 0, ti, 0)),
                pl.BlockSpec((1, 1, s_tile, 128), lambda ni, ti: (ni, 0, ti, 0)),
            ],
            out_specs=pl.BlockSpec((1, 1), lambda ni, ti: (0, 0)),
            scratch_shapes=[
                pltpu.VMEM((c, 8, 128), jnp.float32),   # intersection partials
                pltpu.VMEM((c, 8, 128), jnp.float32),   # sum(probs) partials
                pltpu.VMEM((c, 8, 128), jnp.float32),   # sum(one_hot) partials
            ],
        ),
        compiler_params=pltpu.CompilerParams(
            dimension_semantics=("arbitrary", "arbitrary"),
            vmem_limit_bytes=vmem_limit,
        ),
    )(preds4, tgt4)
    # TODO(synk): on v7x, split the batch/pixel axis across the 2 TensorCores
    # (CORE_PARALLEL / pl.core_map) with per-core (C,) partial outputs and a
    # tiny JAX-side dice/mean epilogue.
    return loss[0, 0]


def dice_loss_ref(preds, targets, *, smooth=1e-6, ignore_index=255):
    """Pure-JAX reference mirroring the PyTorch module."""
    probs = jax.nn.softmax(preds.astype(jnp.float32), axis=1)
    num_classes = preds.shape[1]
    one_hot = jax.nn.one_hot(targets, num_classes, dtype=jnp.float32)   # (N,H,W,C)
    one_hot = jnp.transpose(one_hot, (0, 3, 1, 2))                      # (N,C,H,W)
    if ignore_index is not None:
        mask = (targets != ignore_index)[:, None, :, :].astype(jnp.float32)
        probs = probs * mask
        one_hot = one_hot * mask
    inter = jnp.sum(probs * one_hot, axis=(0, 2, 3))
    union = jnp.sum(probs, axis=(0, 2, 3)) + jnp.sum(one_hot, axis=(0, 2, 3))
    dice = (2.0 * inter + smooth) / (union + smooth)
    return 1.0 - jnp.mean(dice)


if __name__ == "__main__":
    key = jax.random.PRNGKey(0)
    k1, k2, k3 = jax.random.split(key, 3)

    N, C, H, W = 2, 4, 16, 16
    preds = jax.random.normal(k1, (N, C, H, W), dtype=jnp.float32)
    targets = jax.random.randint(k2, (N, H, W), 0, C, dtype=jnp.int32)
    # sprinkle some ignore_index pixels to exercise the mask
    ignore_mask = jax.random.bernoulli(k3, 0.1, (N, H, W))
    targets = jnp.where(ignore_mask, jnp.int32(255), targets)

    loss = jax.block_until_ready(dice_loss_pallas(preds, targets))
    ref = jax.block_until_ready(dice_loss_ref(preds, targets))

    # approx reciprocal in the softmax denominator -> allow ~1e-3 slack
    assert jnp.allclose(loss, ref, atol=2e-3, rtol=2e-3), (loss, ref)

    print("KERNEL_OK")
</pallas_src>

<mosaic_0001>
module attributes {stable_mosaic.version = 11 : i64} {
  func.func @_dice_kernel(%arg0: i32, %arg1: i32, %arg2: memref<1x4x8x128xf32, #tpu.memory_space<vmem>>, %arg3: memref<1x1x8x128xi32, #tpu.memory_space<vmem>>, %arg4: memref<1x1xf32, #tpu.memory_space<vmem>>, %arg5: memref<4x8x128xf32, #tpu.memory_space<vmem>>, %arg6: memref<4x8x128xf32, #tpu.memory_space<vmem>>, %arg7: memref<4x8x128xf32, #tpu.memory_space<vmem>>) attributes {dimension_semantics = [#tpu.dimension_semantics<arbitrary>, #tpu.dimension_semantics<arbitrary>], iteration_bounds = array<i64: 2, 1>, scalar_prefetch = 0 : i64, scratch_operands = 3 : i64, tpu.core_type = #tpu.core_type<tc>, window_params = [{transform_indices = @transform_0, window_bounds = array<i64: 1, 4, 8, 128>}, {transform_indices = @transform_1, window_bounds = array<i64: 1, 1, 8, 128>}, {pipeline_mode = #tpu.pipeline_mode<synchronous>, transform_indices = @transform_2, window_bounds = array<i64: 1, 1>}]} {
    %c0_i32 = arith.constant 0 : i32
    %0 = arith.cmpi eq, %arg0, %c0_i32 : i32
    %c0_i32_0 = arith.constant 0 : i32
    %1 = arith.cmpi eq, %arg1, %c0_i32_0 : i32
    %2 = arith.andi %0, %1 : i1
    %3 = arith.extui %2 : i1 to i32
    %c0_i32_1 = arith.constant 0 : i32
    %4 = arith.cmpi ne, %3, %c0_i32_1 : i32
    scf.if %4 {
      %cst_95 = arith.constant 0.000000e+00 : f32
      %154 = vector.broadcast %cst_95 : f32 to vector<4x8x128xf32>
      %c0_96 = arith.constant 0 : index
      %c0_97 = arith.constant 0 : index
      %c0_98 = arith.constant 0 : index
      %155 = vector.load %arg5[%c0_96, %c0_97, %c0_98] : memref<4x8x128xf32, #tpu.memory_space<vmem>>, vector<4x8x128xf32>
      tpu.vector_store %arg5[%c0_96, %c0_97, %c0_98], %154 {strides = array<i32>} : memref<4x8x128xf32, #tpu.memory_space<vmem>>, vector<4x8x128xf32>,
      %cst_99 = arith.constant 0.000000e+00 : f32
      %156 = vector.broadcast %cst_99 : f32 to vector<4x8x128xf32>
      %c0_100 = arith.constant 0 : index
      %c0_101 = arith.constant 0 : index
      %c0_102 = arith.constant 0 : index
      %157 = vector.load %arg6[%c0_100, %c0_101, %c0_102] : memref<4x8x128xf32, #tpu.memory_space<vmem>>, vector<4x8x128xf32>
      tpu.vector_store %arg6[%c0_100, %c0_101, %c0_102], %156 {strides = array<i32>} : memref<4x8x128xf32, #tpu.memory_space<vmem>>, vector<4x8x128xf32>,
      %cst_103 = arith.constant 0.000000e+00 : f32
      %158 = vector.broadcast %cst_103 : f32 to vector<4x8x128xf32>
      %c0_104 = arith.constant 0 : index
      %c0_105 = arith.constant 0 : index
      %c0_106 = arith.constant 0 : index
      %159 = vector.load %arg7[%c0_104, %c0_105, %c0_106] : memref<4x8x128xf32, #tpu.memory_space<vmem>>, vector<4x8x128xf32>
      tpu.vector_store %arg7[%c0_104, %c0_105, %c0_106], %158 {strides = array<i32>} : memref<4x8x128xf32, #tpu.memory_space<vmem>>, vector<4x8x128xf32>,
    } else {
    }
    %c0 = arith.constant 0 : index
    %c0_2 = arith.constant 0 : index
    %c0_3 = arith.constant 0 : index
    %c0_4 = arith.constant 0 : index
    %5 = vector.load %arg2[%c0, %c0_2, %c0_3, %c0_4] : memref<1x4x8x128xf32, #tpu.memory_space<vmem>>, vector<1x4x8x128xf32>
    %6 = vector.shape_cast %5 : vector<1x4x8x128xf32> to vector<4x8x128xf32>
    %cst = arith.constant dense<0xFF800000> : vector<8x128xf32>
    %7 = vector.multi_reduction <maximumf>, %6, %cst [0] : vector<4x8x128xf32> to vector<8x128xf32>
    %8 = vector.shape_cast %7 : vector<8x128xf32> to vector<1x8x128xf32>
    %9 = vector.broadcast %8 : vector<1x8x128xf32> to vector<4x8x128xf32>
    %10 = arith.subf %6, %9 : vector<4x8x128xf32>
    %11 = math.exp %10 : vector<4x8x128xf32>
    %cst_5 = arith.constant dense<0.000000e+00> : vector<8x128xf32>
    %12 = vector.multi_reduction <add>, %11, %cst_5 [0] : vector<4x8x128xf32> to vector<8x128xf32>
    %13 = tpu.reciprocal %12 {approx = true} : vector<8x128xf32> -> vector<8x128xf32>
    %c0_6 = arith.constant 0 : index
    %c0_7 = arith.constant 0 : index
    %c0_8 = arith.constant 0 : index
    %c0_9 = arith.constant 0 : index
    %14 = vector.load %arg3[%c0_6, %c0_7, %c0_8, %c0_9] : memref<1x1x8x128xi32, #tpu.memory_space<vmem>>, vector<1x1x8x128xi32>
    %15 = vector.shape_cast %14 : vector<1x1x8x128xi32> to vector<8x128xi32>
    %c255_i32 = arith.constant 255 : i32
    %16 = vector.broadcast %c255_i32 : i32 to vector<8x128xi32>
    %17 = arith.cmpi ne, %15, %16 : vector<8x128xi32>
    %18 = arith.extui %17 : vector<8x128xi1> to vector<8x128xi32>
    %19 = arith.sitofp %18 : vector<8x128xi32> to vector<8x128xf32>
    %20 = arith.mulf %13, %19 : vector<8x128xf32>
    %21 = vector.extract_strided_slice %11 {offsets = [0, 0, 0], sizes = [1, 8, 128], strides = [1, 1, 1]} : vector<4x8x128xf32> to vector<1x8x128xf32>
    %22 = vector.shape_cast %21 : vector<1x8x128xf32> to vector<8x128xf32>
    %23 = arith.mulf %22, %20 : vector<8x128xf32>
    %c0_i32_10 = arith.constant 0 : i32
    %24 = vector.broadcast %c0_i32_10 : i32 to vector<8x128xi32>
    %25 = arith.cmpi eq, %15, %24 : vector<8x128xi32>
    %26 = arith.extui %25 : vector<8x128xi1> to vector<8x128xi32>
    %27 = arith.sitofp %26 : vector<8x128xi32> to vector<8x128xf32>
    %c0_11 = arith.constant 0 : index
    %c0_12 = arith.constant 0 : index
    %c0_13 = arith.constant 0 : index
    %28 = vector.load %arg5[%c0_11, %c0_12, %c0_13] : memref<4x8x128xf32, #tpu.memory_space<vmem>>, vector<1x8x128xf32>
    %29 = vector.shape_cast %28 : vector<1x8x128xf32> to vector<8x128xf32>
    %30 = arith.mulf %23, %27 : vector<8x128xf32>
    %31 = vector.shape_cast %30 : vector<8x128xf32> to vector<1x8x128xf32>
    %cst_14 = arith.constant dense<0.000000e+00> : vector<8x128xf32>
    %32 = vector.multi_reduction <add>, %31, %cst_14 [0] : vector<1x8x128xf32> to vector<8x128xf32>
    %33 = arith.addf %29, %32 : vector<8x128xf32>
    %c0_15 = arith.constant 0 : index
    %c0_16 = arith.constant 0 : index
    %c0_17 = arith.constant 0 : index
    %34 = vector.load %arg5[%c0_15, %c0_16, %c0_17] : memref<4x8x128xf32, #tpu.memory_space<vmem>>, vector<1x8x128xf32>
    %35 = vector.shape_cast %34 : vector<1x8x128xf32> to vector<8x128xf32>
    %36 = vector.shape_cast %33 : vector<8x128xf32> to vector<1x8x128xf32>
    tpu.vector_store %arg5[%c0_15, %c0_16, %c0_17], %36 {strides = array<i32>} : memref<4x8x128xf32, #tpu.memory_space<vmem>>, vector<1x8x128xf32>,
    %c0_18 = arith.constant 0 : index
    %c0_19 = arith.constant 0 : index
    %c0_20 = arith.constant 0 : index
    %37 = vector.load %arg6[%c0_18, %c0_19, %c0_20] : memref<4x8x128xf32, #tpu.memory_space<vmem>>, vector<1x8x128xf32>
    %38 = vector.shape_cast %37 : vector<1x8x128xf32> to vector<8x128xf32>
    %39 = vector.shape_cast %23 : vector<8x128xf32> to vector<1x8x128xf32>
    %cst_21 = arith.constant dense<0.000000e+00> : vector<8x128xf32>
    %40 = vector.multi_reduction <add>, %39, %cst_21 [0] : vector<1x8x128xf32> to vector<8x128xf32>
    %41 = arith.addf %38, %40 : vector<8x128xf32>
    %c0_22 = arith.constant 0 : index
    %c0_23 = arith.constant 0 : index
    %c0_24 = arith.constant 0 : index
    %42 = vector.load %arg6[%c0_22, %c0_23, %c0_24] : memref<4x8x128xf32, #tpu.memory_space<vmem>>, vector<1x8x128xf32>
    %43 = vector.shape_cast %42 : vector<1x8x128xf32> to vector<8x128xf32>
    %44 = vector.shape_cast %41 : vector<8x128xf32> to vector<1x8x128xf32>
    tpu.vector_store %arg6[%c0_22, %c0_23, %c0_24], %44 {strides = array<i32>} : memref<4x8x128xf32, #tpu.memory_space<vmem>>, vector<1x8x128xf32>,
    %c0_25 = arith.constant 0 : index
    %c0_26 = arith.constant 0 : index
    %c0_27 = arith.constant 0 : index
    %45 = vector.load %arg7[%c0_25, %c0_26, %c0_27] : memref<4x8x128xf32, #tpu.memory_space<vmem>>, vector<1x8x128xf32>
    %46 = vector.shape_cast %45 : vector<1x8x128xf32> to vector<8x128xf32>
    %47 = vector.shape_cast %27 : vector<8x128xf32> to vector<1x8x128xf32>
    %cst_28 = arith.constant dense<0.000000e+00> : vector<8x128xf32>
    %48 = vector.multi_reduction <add>, %47, %cst_28 [0] : vector<1x8x128xf32> to vector<8x128xf32>
    %49 = arith.addf %46, %48 : vector<8x128xf32>
    %c0_29 = arith.constant 0 : index
    %c0_30 = arith.constant 0 : index
    %c0_31 = arith.constant 0 : index
    %50 = vector.load %arg7[%c0_29, %c0_30, %c0_31] : memref<4x8x128xf32, #tpu.memory_space<vmem>>, vector<1x8x128xf32>
    %51 = vector.shape_cast %50 : vector<1x8x128xf32> to vector<8x128xf32>
    %52 = vector.shape_cast %49 : vector<8x128xf32> to vector<1x8x128xf32>
    tpu.vector_store %arg7[%c0_29, %c0_30, %c0_31], %52 {strides = array<i32>} : memref<4x8x128xf32, #tpu.memory_space<vmem>>, vector<1x8x128xf32>,
    %53 = vector.extract_strided_slice %11 {offsets = [1, 0, 0], sizes = [1, 8, 128], strides = [1, 1, 1]} : vector<4x8x128xf32> to vector<1x8x128xf32>
    %54 = vector.shape_cast %53 : vector<1x8x128xf32> to vector<8x128xf32>
    %55 = arith.mulf %54, %20 : vector<8x128xf32>
    %c1_i32 = arith.constant 1 : i32
    %56 = vector.broadcast %c1_i32 : i32 to vector<8x128xi32>
    %57 = arith.cmpi eq, %15, %56 : vector<8x128xi32>
    %58 = arith.extui %57 : vector<8x128xi1> to vector<8x128xi32>
    %59 = arith.sitofp %58 : vector<8x128xi32> to vector<8x128xf32>
    %c1 = arith.constant 1 : index
    %c0_32 = arith.constant 0 : index
    %c0_33 = arith.constant 0 : index
    %60 = vector.load %arg5[%c1, %c0_32, %c0_33] : memref<4x8x128xf32, #tpu.memory_space<vmem>>, vector<1x8x128xf32>
    %61 = vector.shape_cast %60 : vector<1x8x128xf32> to vector<8x128xf32>
    %62 = arith.mulf %55, %59 : vector<8x128xf32>
    %63 = vector.shape_cast %62 : vector<8x128xf32> to vector<1x8x128xf32>
    %cst_34 = arith.constant dense<0.000000e+00> : vector<8x128xf32>
    %64 = vector.multi_reduction <add>, %63, %cst_34 [0] : vector<1x8x128xf32> to vector<8x128xf32>
    %65 = arith.addf %61, %64 : vector<8x128xf32>
    %c1_35 = arith.constant 1 : index
    %c0_36 = arith.constant 0 : index
    %c0_37 = arith.constant 0 : index
    %66 = vector.load %arg5[%c1_35, %c0_36, %c0_37] : memref<4x8x128xf32, #tpu.memory_space<vmem>>, vector<1x8x128xf32>
    %67 = vector.shape_cast %66 : vector<1x8x128xf32> to vector<8x128xf32>
    %68 = vector.shape_cast %65 : vector<8x128xf32> to vector<1x8x128xf32>
    tpu.vector_store %arg5[%c1_35, %c0_36, %c0_37], %68 {strides = array<i32>} : memref<4x8x128xf32, #tpu.memory_space<vmem>>, vector<1x8x128xf32>,
    %c1_38 = arith.constant 1 : index
    %c0_39 = arith.constant 0 : index
    %c0_40 = arith.constant 0 : index
    %69 = vector.load %arg6[%c1_38, %c0_39, %c0_40] : memref<4x8x128xf32, #tpu.memory_space<vmem>>, vector<1x8x128xf32>
    %70 = vector.shape_cast %69 : vector<1x8x128xf32> to vector<8x128xf32>
    %71 = vector.shape_cast %55 : vector<8x128xf32> to vector<1x8x128xf32>
    %cst_41 = arith.constant dense<0.000000e+00> : vector<8x128xf32>
    %72 = vector.multi_reduction <add>, %71, %cst_41 [0] : vector<1x8x128xf32> to vector<8x128xf32>
    %73 = arith.addf %70, %72 : vector<8x128xf32>
    %c1_42 = arith.constant 1 : index
    %c0_43 = arith.constant 0 : index
    %c0_44 = arith.constant 0 : index
    %74 = vector.load %arg6[%c1_42, %c0_43, %c0_44] : memref<4x8x128xf32, #tpu.memory_space<vmem>>, vector<1x8x128xf32>
    %75 = vector.shape_cast %74 : vector<1x8x128xf32> to vector<8x128xf32>
    %76 = vector.shape_cast %73 : vector<8x128xf32> to vector<1x8x128xf32>
    tpu.vector_store %arg6[%c1_42, %c0_43, %c0_44], %76 {strides = array<i32>} : memref<4x8x128xf32, #tpu.memory_space<vmem>>, vector<1x8x128xf32>,
    %c1_45 = arith.constant 1 : index
    %c0_46 = arith.constant 0 : index
    %c0_47 = arith.constant 0 : index
    %77 = vector.load %arg7[%c1_45, %c0_46, %c0_47] : memref<4x8x128xf32, #tpu.memory_space<vmem>>, vector<1x8x128xf32>
    %78 = vector.shape_cast %77 : vector<1x8x128xf32> to vector<8x128xf32>
    %79 = vector.shape_cast %59 : vector<8x128xf32> to vector<1x8x128xf32>
    %cst_48 = arith.constant dense<0.000000e+00> : vector<8x128xf32>
    %80 = vector.multi_reduction <add>, %79, %cst_48 [0] : vector<1x8x128xf32> to vector<8x128xf32>
    %81 = arith.addf %78, %80 : vector<8x128xf32>
    %c1_49 = arith.constant 1 : index
    %c0_50 = arith.constant 0 : index
    %c0_51 = arith.constant 0 : index
    %82 = vector.load %arg7[%c1_49, %c0_50, %c0_51] : memref<4x8x128xf32, #tpu.memory_space<vmem>>, vector<1x8x128xf32>
    %83 = vector.shape_cast %82 : vector<1x8x128xf32> to vector<8x128xf32>
    %84 = vector.shape_cast %81 : vector<8x128xf32> to vector<1x8x128xf32>
    tpu.vector_store %arg7[%c1_49, %c0_50, %c0_51], %84 {strides = array<i32>} : memref<4x8x128xf32, #tpu.memory_space<vmem>>, vector<1x8x128xf32>,
    %85 = vector.extract_strided_slice %11 {offsets = [2, 0, 0], sizes = [1, 8, 128], strides = [1, 1, 1]} : vector<4x8x128xf32> to vector<1x8x128xf32>
    %86 = vector.shape_cast %85 : vector<1x8x128xf32> to vector<8x128xf32>
    %87 = arith.mulf %86, %20 : vector<8x128xf32>
    %c2_i32 = arith.constant 2 : i32
    %88 = vector.broadcast %c2_i32 : i32 to vector<8x128xi32>
    %89 = arith.cmpi eq, %15, %88 : vector<8x128xi32>
    %90 = arith.extui %89 : vector<8x128xi1> to vector<8x128xi32>
    %91 = arith.sitofp %90 : vector<8x128xi32> to vector<8x128xf32>
    %c2 = arith.constant 2 : index
    %c0_52 = arith.constant 0 : index
    %c0_53 = arith.constant 0 : index
    %92 = vector.load %arg5[%c2, %c0_52, %c0_53] : memref<4x8x128xf32, #tpu.memory_space<vmem>>, vector<1x8x128xf32>
    %93 = vector.shape_cast %92 : vector<1x8x128xf32> to vector<8x128xf32>
    %94 = arith.mulf %87, %91 : vector<8x128xf32>
    %95 = vector.shape_cast %94 : vector<8x128xf32> to vector<1x8x128xf32>
    %cst_54 = arith.constant dense<0.000000e+00> : vector<8x128xf32>
    %96 = vector.multi_reduction <add>, %95, %cst_54 [0] : vector<1x8x128xf32> to vector<8x128xf32>
    %97 = arith.addf %93, %96 : vector<8x128xf32>
    %c2_55 = arith.constant 2 : index
    %c0_56 = arith.constant 0 : index
    %c0_57 = arith.constant 0 : index
    %98 = vector.load %arg5[%c2_55, %c0_56, %c0_57] : memref<4x8x128xf32, #tpu.memory_space<vmem>>, vector<1x8x128xf32>
    %99 = vector.shape_cast %98 : vector<1x8x128xf32> to vector<8x128xf32>
    %100 = vector.shape_cast %97 : vector<8x128xf32> to vector<1x8x128xf32>
    tpu.vector_store %arg5[%c2_55, %c0_56, %c0_57], %100 {strides = array<i32>} : memref<4x8x128xf32, #tpu.memory_space<vmem>>, vector<1x8x128xf32>,
    %c2_58 = arith.constant 2 : index
    %c0_59 = arith.constant 0 : index
    %c0_60 = arith.constant 0 : index
    %101 = vector.load %arg6[%c2_58, %c0_59, %c0_60] : memref<4x8x128xf32, #tpu.memory_space<vmem>>, vector<1x8x128xf32>
    %102 = vector.shape_cast %101 : vector<1x8x128xf32> to vector<8x128xf32>
    %103 = vector.shape_cast %87 : vector<8x128xf32> to vector<1x8x128xf32>
    %cst_61 = arith.constant dense<0.000000e+00> : vector<8x128xf32>
    %104 = vector.multi_reduction <add>, %103, %cst_61 [0] : vector<1x8x128xf32> to vector<8x128xf32>
    %105 = arith.addf %102, %104 : vector<8x128xf32>
    %c2_62 = arith.constant 2 : index
    %c0_63 = arith.constant 0 : index
    %c0_64 = arith.constant 0 : index
    %106 = vector.load %arg6[%c2_62, %c0_63, %c0_64] : memref<4x8x128xf32, #tpu.memory_space<vmem>>, vector<1x8x128xf32>
    %107 = vector.shape_cast %106 : vector<1x8x128xf32> to vector<8x128xf32>
    %108 = vector.shape_cast %105 : vector<8x128xf32> to vector<1x8x128xf32>
    tpu.vector_store %arg6[%c2_62, %c0_63, %c0_64], %108 {strides = array<i32>} : memref<4x8x128xf32, #tpu.memory_space<vmem>>, vector<1x8x128xf32>,
    %c2_65 = arith.constant 2 : index
    %c0_66 = arith.constant 0 : index
    %c0_67 = arith.constant 0 : index
    %109 = vector.load %arg7[%c2_65, %c0_66, %c0_67] : memref<4x8x128xf32, #tpu.memory_space<vmem>>, vector<1x8x128xf32>
    %110 = vector.shape_cast %109 : vector<1x8x128xf32> to vector<8x128xf32>
    %111 = vector.shape_cast %91 : vector<8x128xf32> to vector<1x8x128xf32>
    %cst_68 = arith.constant dense<0.000000e+00> : vector<8x128xf32>
    %112 = vector.multi_reduction <add>, %111, %cst_68 [0] : vector<1x8x128xf32> to vector<8x128xf32>
    %113 = arith.addf %110, %112 : vector<8x128xf32>
    %c2_69 = arith.constant 2 : index
    %c0_70 = arith.constant 0 : index
    %c0_71 = arith.constant 0 : index
    %114 = vector.load %arg7[%c2_69, %c0_70, %c0_71] : memref<4x8x128xf32, #tpu.memory_space<vmem>>, vector<1x8x128xf32>
    %115 = vector.shape_cast %114 : vector<1x8x128xf32> to vector<8x128xf32>
    %116 = vector.shape_cast %113 : vector<8x128xf32> to vector<1x8x128xf32>
    tpu.vector_store %arg7[%c2_69, %c0_70, %c0_71], %116 {strides = array<i32>} : memref<4x8x128xf32, #tpu.memory_space<vmem>>, vector<1x8x128xf32>,
    %117 = vector.extract_strided_slice %11 {offsets = [3, 0, 0], sizes = [1, 8, 128], strides = [1, 1, 1]} : vector<4x8x128xf32> to vector<1x8x128xf32>
    %118 = vector.shape_cast %117 : vector<1x8x128xf32> to vector<8x128xf32>
    %119 = arith.mulf %118, %20 : vector<8x128xf32>
    %c3_i32 = arith.constant 3 : i32
    %120 = vector.broadcast %c3_i32 : i32 to vector<8x128xi32>
    %121 = arith.cmpi eq, %15, %120 : vector<8x128xi32>
    %122 = arith.extui %121 : vector<8x128xi1> to vector<8x128xi32>
    %123 = arith.sitofp %122 : vector<8x128xi32> to vector<8x128xf32>
    %c3 = arith.constant 3 : index
    %c0_72 = arith.constant 0 : index
    %c0_73 = arith.constant 0 : index
    %124 = vector.load %arg5[%c3, %c0_72, %c0_73] : memref<4x8x128xf32, #tpu.memory_space<vmem>>, vector<1x8x128xf32>
    %125 = vector.shape_cast %124 : vector<1x8x128xf32> to vector<8x128xf32>
    %126 = arith.mulf %119, %123 : vector<8x128xf32>
    %127 = vector.shape_cast %126 : vector<8x128xf32> to vector<1x8x128xf32>
    %cst_74 = arith.constant dense<0.000000e+00> : vector<8x128xf32>
    %128 = vector.multi_reduction <add>, %127, %cst_74 [0] : vector<1x8x128xf32> to vector<8x128xf32>
    %129 = arith.addf %125, %128 : vector<8x128xf32>
    %c3_75 = arith.constant 3 : index
    %c0_76 = arith.constant 0 : index
    %c0_77 = arith.constant 0 : index
    %130 = vector.load %arg5[%c3_75, %c0_76, %c0_77] : memref<4x8x128xf32, #tpu.memory_space<vmem>>, vector<1x8x128xf32>
    %131 = vector.shape_cast %130 : vector<1x8x128xf32> to vector<8x128xf32>
    %132 = vector.shape_cast %129 : vector<8x128xf32> to vector<1x8x128xf32>
    tpu.vector_store %arg5[%c3_75, %c0_76, %c0_77], %132 {strides = array<i32>} : memref<4x8x128xf32, #tpu.memory_space<vmem>>, vector<1x8x128xf32>,
    %c3_78 = arith.constant 3 : index
    %c0_79 = arith.constant 0 : index
    %c0_80 = arith.constant 0 : index
    %133 = vector.load %arg6[%c3_78, %c0_79, %c0_80] : memref<4x8x128xf32, #tpu.memory_space<vmem>>, vector<1x8x128xf32>
    %134 = vector.shape_cast %133 : vector<1x8x128xf32> to vector<8x128xf32>
    %135 = vector.shape_cast %119 : vector<8x128xf32> to vector<1x8x128xf32>
    %cst_81 = arith.constant dense<0.000000e+00> : vector<8x128xf32>
    %136 = vector.multi_reduction <add>, %135, %cst_81 [0] : vector<1x8x128xf32> to vector<8x128xf32>
    %137 = arith.addf %134, %136 : vector<8x128xf32>
    %c3_82 = arith.constant 3 : index
    %c0_83 = arith.constant 0 : index
    %c0_84 = arith.constant 0 : index
    %138 = vector.load %arg6[%c3_82, %c0_83, %c0_84] : memref<4x8x128xf32, #tpu.memory_space<vmem>>, vector<1x8x128xf32>
    %139 = vector.shape_cast %138 : vector<1x8x128xf32> to vector<8x128xf32>
    %140 = vector.shape_cast %137 : vector<8x128xf32> to vector<1x8x128xf32>
    tpu.vector_store %arg6[%c3_82, %c0_83, %c0_84], %140 {strides = array<i32>} : memref<4x8x128xf32, #tpu.memory_space<vmem>>, vector<1x8x128xf32>,
    %c3_85 = arith.constant 3 : index
    %c0_86 = arith.constant 0 : index
    %c0_87 = arith.constant 0 : index
    %141 = vector.load %arg7[%c3_85, %c0_86, %c0_87] : memref<4x8x128xf32, #tpu.memory_space<vmem>>, vector<1x8x128xf32>
    %142 = vector.shape_cast %141 : vector<1x8x128xf32> to vector<8x128xf32>
    %143 = vector.shape_cast %123 : vector<8x128xf32> to vector<1x8x128xf32>
    %cst_88 = arith.constant dense<0.000000e+00> : vector<8x128xf32>
    %144 = vector.multi_reduction <add>, %143, %cst_88 [0] : vector<1x8x128xf32> to vector<8x128xf32>
    %145 = arith.addf %142, %144 : vector<8x128xf32>
    %c3_89 = arith.constant 3 : index
    %c0_90 = arith.constant 0 : index
    %c0_91 = arith.constant 0 : index
    %146 = vector.load %arg7[%c3_89, %c0_90, %c0_91] : memref<4x8x128xf32, #tpu.memory_space<vmem>>, vector<1x8x128xf32>
    %147 = vector.shape_cast %146 : vector<1x8x128xf32> to vector<8x128xf32>
    %148 = vector.shape_cast %145 : vector<8x128xf32> to vector<1x8x128xf32>
    tpu.vector_store %arg7[%c3_89, %c0_90, %c0_91], %148 {strides = array<i32>} : memref<4x8x128xf32, #tpu.memory_space<vmem>>, vector<1x8x128xf32>,
    %c1_i32_92 = arith.constant 1 : i32
    %149 = arith.cmpi eq, %arg0, %c1_i32_92 : i32
    %c0_i32_93 = arith.constant 0 : i32
    %150 = arith.cmpi eq, %arg1, %c0_i32_93 : i32
    %151 = arith.andi %149, %150 : i1
    %152 = arith.extui %151 : i1 to i32
    %c0_i32_94 = arith.constant 0 : i32
    %153 = arith.cmpi ne, %152, %c0_i32_94 : i32
    scf.if %153 {
      %c0_95 = arith.constant 0 : index
      %c0_96 = arith.constant 0 : index
      %c0_97 = arith.constant 0 : index
      %154 = vector.load %arg5[%c0_95, %c0_96, %c0_97] : memref<4x8x128xf32, #tpu.memory_space<vmem>>, vector<1x8x128xf32>
      %155 = vector.shape_cast %154 : vector<1x8x128xf32> to vector<8x128xf32>
      %156 = vector.shape_cast %155 : vector<8x128xf32> to vector<1x8x128xf32>
      %cst_98 = arith.constant dense<0.000000e+00> : vector<1xf32>
      %157 = vector.multi_reduction <add>, %156, %cst_98 [1, 2] : vector<1x8x128xf32> to vector<1xf32>
      %158 = vector.shape_cast %157 : vector<1xf32> to vector<1x1x1xf32>
      %159 = vector.extract %158[0, 0, 0] : f32 from vector<1x1x1xf32>
      %c0_99 = arith.constant 0 : index
      %c0_100 = arith.constant 0 : index
      %c0_101 = arith.constant 0 : index
      %160 = vector.load %arg6[%c0_99, %c0_100, %c0_101] : memref<4x8x128xf32, #tpu.memory_space<vmem>>, vector<1x8x128xf32>
      %161 = vector.shape_cast %160 : vector<1x8x128xf32> to vector<8x128xf32>
      %162 = vector.shape_cast %161 : vector<8x128xf32> to vector<1x8x128xf32>
      %cst_102 = arith.constant dense<0.000000e+00> : vector<1xf32>
      %163 = vector.multi_reduction <add>, %162, %cst_102 [1, 2] : vector<1x8x128xf32> to vector<1xf32>
      %164 = vector.shape_cast %163 : vector<1xf32> to vector<1x1x1xf32>
      %165 = vector.extract %164[0, 0, 0] : f32 from vector<1x1x1xf32>
      %c0_103 = arith.constant 0 : index
      %c0_104 = arith.constant 0 : index
      %c0_105 = arith.constant 0 : index
      %166 = vector.load %arg7[%c0_103, %c0_104, %c0_105] : memref<4x8x128xf32, #tpu.memory_space<vmem>>, vector<1x8x128xf32>
      %167 = vector.shape_cast %166 : vector<1x8x128xf32> to vector<8x128xf32>
      %168 = vector.shape_cast %167 : vector<8x128xf32> to vector<1x8x128xf32>
      %cst_106 = arith.constant dense<0.000000e+00> : vector<1xf32>
      %169 = vector.multi_reduction <add>, %168, %cst_106 [1, 2] : vector<1x8x128xf32> to vector<1xf32>
      %170 = vector.shape_cast %169 : vector<1xf32> to vector<1x1x1xf32>
      %171 = vector.extract %170[0, 0, 0] : f32 from vector<1x1x1xf32>
      %172 = arith.addf %165, %171 : f32
      %cst_107 = arith.constant 2.000000e+00 : f32
      %173 = arith.mulf %cst_107, %159 : f32
      %cst_108 = arith.constant 9.99999997E-7 : f32
      %174 = arith.addf %173, %cst_108 : f32
      %cst_109 = arith.constant 9.99999997E-7 : f32
      %175 = arith.addf %172, %cst_109 : f32
      %176 = arith.divf %174, %175 : f32
      %cst_110 = arith.constant 0.000000e+00 : f32
      %177 = arith.addf %cst_110, %176 : f32
      %c1_111 = arith.constant 1 : index
      %c0_112 = arith.constant 0 : index
      %c0_113 = arith.constant 0 : index
      %178 = vector.load %arg5[%c1_111, %c0_112, %c0_113] : memref<4x8x128xf32, #tpu.memory_space<vmem>>, vector<1x8x128xf32>
      %179 = vector.shape_cast %178 : vector<1x8x128xf32> to vector<8x128xf32>
      %180 = vector.shape_cast %179 : vector<8x128xf32> to vector<1x8x128xf32>
      %cst_114 = arith.constant dense<0.000000e+00> : vector<1xf32>
      %181 = vector.multi_reduction <add>, %180, %cst_114 [1, 2] : vector<1x8x128xf32> to vector<1xf32>
      %182 = vector.shape_cast %181 : vector<1xf32> to vector<1x1x1xf32>
      %183 = vector.extract %182[0, 0, 0] : f32 from vector<1x1x1xf32>
      %c1_115 = arith.constant 1 : index
      %c0_116 = arith.constant 0 : index
      %c0_117 = arith.constant 0 : index
      %184 = vector.load %arg6[%c1_115, %c0_116, %c0_117] : memref<4x8x128xf32, #tpu.memory_space<vmem>>, vector<1x8x128xf32>
      %185 = vector.shape_cast %184 : vector<1x8x128xf32> to vector<8x128xf32>
      %186 = vector.shape_cast %185 : vector<8x128xf32> to vector<1x8x128xf32>
      %cst_118 = arith.constant dense<0.000000e+00> : vector<1xf32>
      %187 = vector.multi_reduction <add>, %186, %cst_118 [1, 2] : vector<1x8x128xf32> to vector<1xf32>
      %188 = vector.shape_cast %187 : vector<1xf32> to vector<1x1x1xf32>
      %189 = vector.extract %188[0, 0, 0] : f32 from vector<1x1x1xf32>
      %c1_119 = arith.constant 1 : index
      %c0_120 = arith.constant 0 : index
      %c0_121 = arith.constant 0 : index
      %190 = vector.load %arg7[%c1_119, %c0_120, %c0_121] : memref<4x8x128xf32, #tpu.memory_space<vmem>>, vector<1x8x128xf32>
      %191 = vector.shape_cast %190 : vector<1x8x128xf32> to vector<8x128xf32>
      %192 = vector.shape_cast %191 : vector<8x128xf32> to vector<1x8x128xf32>
      %cst_122 = arith.constant dense<0.000000e+00> : vector<1xf32>
      %193 = vector.multi_reduction <add>, %192, %cst_122 [1, 2] : vector<1x8x128xf32> to vector<1xf32>
      %194 = vector.shape_cast %193 : vector<1xf32> to vector<1x1x1xf32>
      %195 = vector.extract %194[0, 0, 0] : f32 from vector<1x1x1xf32>
      %196 = arith.addf %189, %195 : f32
      %cst_123 = arith.constant 2.000000e+00 : f32
      %197 = arith.mulf %cst_123, %183 : f32
      %cst_124 = arith.constant 9.99999997E-7 : f32
      %198 = arith.addf %197, %cst_124 : f32
      %cst_125 = arith.constant 9.99999997E-7 : f32
      %199 = arith.addf %196, %cst_125 : f32
      %200 = arith.divf %198, %199 : f32
      %201 = arith.addf %177, %200 : f32
      %c2_126 = arith.constant 2 : index
      %c0_127 = arith.constant 0 : index
      %c0_128 = arith.constant 0 : index
      %202 = vector.load %arg5[%c2_126, %c0_127, %c0_128] : memref<4x8x128xf32, #tpu.memory_space<vmem>>, vector<1x8x128xf32>
      %203 = vector.shape_cast %202 : vector<1x8x128xf32> to vector<8x128xf32>
      %204 = vector.shape_cast %203 : vector<8x128xf32> to vector<1x8x128xf32>
      %cst_129 = arith.constant dense<0.000000e+00> : vector<1xf32>
      %205 = vector.multi_reduction <add>, %204, %cst_129 [1, 2] : vector<1x8x128xf32> to vector<1xf32>
      %206 = vector.shape_cast %205 : vector<1xf32> to vector<1x1x1xf32>
      %207 = vector.extract %206[0, 0, 0] : f32 from vector<1x1x1xf32>
      %c2_130 = arith.constant 2 : index
      %c0_131 = arith.constant 0 : index
      %c0_132 = arith.constant 0 : index
      %208 = vector.load %arg6[%c2_130, %c0_131, %c0_132] : memref<4x8x128xf32, #tpu.memory_space<vmem>>, vector<1x8x128xf32>
      %209 = vector.shape_cast %208 : vector<1x8x128xf32> to vector<8x128xf32>
      %210 = vector.shape_cast %209 : vector<8x128xf32> to vector<1x8x128xf32>
      %cst_133 = arith.constant dense<0.000000e+00> : vector<1xf32>
      %211 = vector.multi_reduction <add>, %210, %cst_133 [1, 2] : vector<1x8x128xf32> to vector<1xf32>
      %212 = vector.shape_cast %211 : vector<1xf32> to vector<1x1x1xf32>
      %213 = vector.extract %212[0, 0, 0] : f32 from vector<1x1x1xf32>
      %c2_134 = arith.constant 2 : index
      %c0_135 = arith.constant 0 : index
      %c0_136 = arith.constant 0 : index
      %214 = vector.load %arg7[%c2_134, %c0_135, %c0_136] : memref<4x8x128xf32, #tpu.memory_space<vmem>>, vector<1x8x128xf32>
      %215 = vector.shape_cast %214 : vector<1x8x128xf32> to vector<8x128xf32>
      %216 = vector.shape_cast %215 : vector<8x128xf32> to vector<1x8x128xf32>
      %cst_137 = arith.constant dense<0.000000e+00> : vector<1xf32>
      %217 = vector.multi_reduction <add>, %216, %cst_137 [1, 2] : vector<1x8x128xf32> to vector<1xf32>
      %218 = vector.shape_cast %217 : vector<1xf32> to vector<1x1x1xf32>
      %219 = vector.extract %218[0, 0, 0] : f32 from vector<1x1x1xf32>
      %220 = arith.addf %213, %219 : f32
      %cst_138 = arith.constant 2.000000e+00 : f32
      %221 = arith.mulf %cst_138, %207 : f32
      %cst_139 = arith.constant 9.99999997E-7 : f32
      %222 = arith.addf %221, %cst_139 : f32
      %cst_140 = arith.constant 9.99999997E-7 : f32
      %223 = arith.addf %220, %cst_140 : f32
      %224 = arith.divf %222, %223 : f32
      %225 = arith.addf %201, %224 : f32
      %c3_141 = arith.constant 3 : index
      %c0_142 = arith.constant 0 : index
      %c0_143 = arith.constant 0 : index
      %226 = vector.load %arg5[%c3_141, %c0_142, %c0_143] : memref<4x8x128xf32, #tpu.memory_space<vmem>>, vector<1x8x128xf32>
      %227 = vector.shape_cast %226 : vector<1x8x128xf32> to vector<8x128xf32>
      %228 = vector.shape_cast %227 : vector<8x128xf32> to vector<1x8x128xf32>
      %cst_144 = arith.constant dense<0.000000e+00> : vector<1xf32>
      %229 = vector.multi_reduction <add>, %228, %cst_144 [1, 2] : vector<1x8x128xf32> to vector<1xf32>
      %230 = vector.shape_cast %229 : vector<1xf32> to vector<1x1x1xf32>
      %231 = vector.extract %230[0, 0, 0] : f32 from vector<1x1x1xf32>
      %c3_145 = arith.constant 3 : index
      %c0_146 = arith.constant 0 : index
      %c0_147 = arith.constant 0 : index
      %232 = vector.load %arg6[%c3_145, %c0_146, %c0_147] : memref<4x8x128xf32, #tpu.memory_space<vmem>>, vector<1x8x128xf32>
      %233 = vector.shape_cast %232 : vector<1x8x128xf32> to vector<8x128xf32>
      %234 = vector.shape_cast %233 : vector<8x128xf32> to vector<1x8x128xf32>
      %cst_148 = arith.constant dense<0.000000e+00> : vector<1xf32>
      %235 = vector.multi_reduction <add>, %234, %cst_148 [1, 2] : vector<1x8x128xf32> to vector<1xf32>
      %236 = vector.shape_cast %235 : vector<1xf32> to vector<1x1x1xf32>
      %237 = vector.extract %236[0, 0, 0] : f32 from vector<1x1x1xf32>
      %c3_149 = arith.constant 3 : index
      %c0_150 = arith.constant 0 : index
      %c0_151 = arith.constant 0 : index
      %238 = vector.load %arg7[%c3_149, %c0_150, %c0_151] : memref<4x8x128xf32, #tpu.memory_space<vmem>>, vector<1x8x128xf32>
      %239 = vector.shape_cast %238 : vector<1x8x128xf32> to vector<8x128xf32>
      %240 = vector.shape_cast %239 : vector<8x128xf32> to vector<1x8x128xf32>
      %cst_152 = arith.constant dense<0.000000e+00> : vector<1xf32>
      %241 = vector.multi_reduction <add>, %240, %cst_152 [1, 2] : vector<1x8x128xf32> to vector<1xf32>
      %242 = vector.shape_cast %241 : vector<1xf32> to vector<1x1x1xf32>
      %243 = vector.extract %242[0, 0, 0] : f32 from vector<1x1x1xf32>
      %244 = arith.addf %237, %243 : f32
      %cst_153 = arith.constant 2.000000e+00 : f32
      %245 = arith.mulf %cst_153, %231 : f32
      %cst_154 = arith.constant 9.99999997E-7 : f32
      %246 = arith.addf %245, %cst_154 : f32
      %cst_155 = arith.constant 9.99999997E-7 : f32
      %247 = arith.addf %244, %cst_155 : f32
      %248 = arith.divf %246, %247 : f32
      %249 = arith.addf %225, %248 : f32
      %cst_156 = arith.constant 4.000000e+00 : f32
      %250 = arith.divf %249, %cst_156 : f32
      %cst_157 = arith.constant 1.000000e+00 : f32
      %251 = arith.subf %cst_157, %250 : f32
      %252 = vector.broadcast %251 : f32 to vector<1x1xf32>
      %c0_158 = arith.constant 0 : index
      %c0_159 = arith.constant 0 : index
      %253 = vector.load %arg4[%c0_158, %c0_159] : memref<1x1xf32, #tpu.memory_space<vmem>>, vector<1x1xf32>
      tpu.vector_store %arg4[%c0_158, %c0_159], %252 {strides = array<i32>} : memref<1x1xf32, #tpu.memory_space<vmem>>, vector<1x1xf32>,
    } else {
    }
    return
  }
  func.func @transform_0(%arg0: i32, %arg1: i32) -> (i32, i32, i32, i32) {
    %c0_i32 = arith.constant 0 : i32
    %c0_i32_0 = arith.constant 0 : i32
    %c0_i32_1 = arith.constant 0 : i32
    return %arg0, %c0_i32, %arg1, %c0_i32_0 : i32, i32, i32, i32
  }
  func.func @transform_1(%arg0: i32, %arg1: i32) -> (i32, i32, i32, i32) {
    %c0_i32 = arith.constant 0 : i32
    %c0_i32_0 = arith.constant 0 : i32
    %c0_i32_1 = arith.constant 0 : i32
    return %arg0, %c0_i32, %arg1, %c0_i32_0 : i32, i32, i32, i32
  }
  func.func @transform_2(%arg0: i32, %arg1: i32) -> (i32, i32) {
    %c0_i32 = arith.constant 0 : i32
    %c0_i32_0 = arith.constant 0 : i32
    %c0_i32_1 = arith.constant 0 : i32
    return %c0_i32, %c0_i32_0 : i32, i32
  }
}

</mosaic_0001>

<llo_original>
// kernel: tpu_custom_call.1
$region0: #{tpu_custom_call.1}
  #allocation0 [shape = 'u32[]', space=smem, size = 0x4, offset = 0x4, fixed_abs, tag = 'smem constant byte address 0x4 - core index']
  #allocation1 [shape = 'u32[72,128]{1,0:T(1,128)}', space=vmem, size = 0x9000, scoped, tag = 'internal scratch']
  #allocation2 [shape = 'f32[4,8,128]{2,1,0:T(8,128)}', space=vmem, size = 0x4000, scoped, tag = 'scratch operand']
  #allocation3 [shape = 'f32[4,8,128]{2,1,0:T(8,128)}', space=vmem, size = 0x4000, scoped, tag = 'scratch operand']
  #allocation4 [shape = 'f32[4,8,128]{2,1,0:T(8,128)}', space=vmem, size = 0x4000, scoped, tag = 'scratch operand']
  %s0 = inlined_call_operand.hbm [shape: f32[2,4,8,128], index: 0, kind: input, shape index: {}]
  %s1 = inlined_call_operand.hbm [shape: s32[2,1,8,128], index: 1, kind: input, shape index: {}]
  %s2 = inlined_call_operand.hbm [shape: f32[1,1], index: 2, kind: output, shape index: {}]
  %s3 = sld [smem:[#allocation0]]
  $region57: #{tpu_custom_call.1} parent=0
    _
  %s5 = ssub.s32 1, %s3
  %s6 = scalar_select 0, %s5, %s3
  $region1: #{tpu_custom_call.1} parent=0
    #allocation5 [shape = 'u8[32768]{0}', space=vmem, size = 0x8000, scoped, tag = 'input window, operand 0']
    #allocation6 [shape = 's32[2]{0}', space=sflag, size = 0x8, scoped, tag = 'scoped memory for tpu_custom_call.1']
    #allocation7 [shape = 's32[2]{0}', space=sflag, size = 0x8, scoped, tag = 'scoped memory for tpu_custom_call.1']
    #allocation8 [shape = 'u8[8192]{0}', space=vmem, size = 0x2000, scoped, tag = 'input window, operand 1']
    #allocation9 [shape = 's32[2]{0}', space=sflag, size = 0x8, scoped, tag = 'scoped memory for tpu_custom_call.1']
    #allocation10 [shape = 'u8[512]{0}', space=vmem, size = 0x400, scoped, tag = 'output window, operand 0, single buffered']
    %7 = vsyncpa [#allocation6], 0
    %s8 = scalar_lea.sflag [#allocation6], 1
    %9 = vsyncpa %s8, 0
    %10 = vsyncpa [#allocation9], 0
    %s11 = scalar_lea.sflag [#allocation9], 1
    %12 = vsyncpa %s11, 0
    %13 = vsyncpa [#allocation7], 0
    loop: start=0, step=1, limit=4
    $region2: #{tpu_custom_call.1} parent=1 // loop_pre_header
      _
    $region3: #{tpu_custom_call.1} parent=1 // loop_header
      %s15 = sphi 0, %s19
      %p16 = scmp.ge.s32.totalorder %s15, 4
      %s22 = sphi 0, %s34
      %s23 = sphi 0, %s30
      %s24 = sphi 0, %s22
      %s25 = sphi 0, %s23
      %s26 = sphi 0, %s24
      %s27 = sphi 0, %s25
      %s39 = sphi 0, %s41
      %s42 = sphi 0, %s39
      %s43 = sphi 0, %s42
      %s59 = sphi 0, %s43
      %s67 = sphi 0, %s69
      %s70 = sphi 0, %s67
      %s71 = sphi 0, %s70
      %s87 = sphi 0, %s71
      %s91 = sphi 0, %s91
      %s93 = sphi 0, %s91
      %s94 = sphi 0, %s93
      %s108 = sphi 0, %s94
    $region4: #{tpu_custom_call.1} parent=1 // loop_header_branch
      %18 = sbr.rel (%p16) target = $region8
    $region5: #{tpu_custom_call.1} parent=1 // loop_body
      %s20 = ssub.s32 %s15, 1
      %s21 = ssub.s32 %s15, 2
      %s28 = sadd.s32 1, %s23
      %p29 = scmp.ge.s32.totalorder %s28, 1
      %s30 = scalar_select %p29, 0, %s28
      %s31 = sadd.s32 1, %s22
      %s32 = scalar_select %p29, %s31, %s22
      %p33 = scmp.ge.s32.totalorder %s32, 2
      %s34 = scalar_select %p33, 0, %s32
      %s35 = ssub.s32 %s22, %s34
      %s36 = ssub.s32 %s23, %s30
      %s37 = sor.u32 %s35, %s36
      %p38 = scmp.eq.s32.totalorder %s37, 0
      %s40 = sadd.s32 %s39, 1
      %s41 = scalar_select %p38, %s39, %s40
      %p44 = pneg %p38
      %p45 = scmp.eq.s32.totalorder %s15, 1
      %p46 = por %p44, %p45
      %p47 = scmp.ne.s32.totalorder %s39, %s42
      %p48 = scmp.eq.s32.totalorder %s15, 0
      %p49 = por %p47, %p48
      %p50 = scmp.ne.s32.totalorder %s39, %s42
      %p51 = scmp.eq.s32.totalorder %s20, 1
      %p52 = por %p50, %p51
      %p53 = scmp.ne.s32.totalorder %s42, %s43
      %p54 = scmp.eq.s32.totalorder %s20, 0
      %p55 = por %p53, %p54
      %p56 = scmp.ne.s32.totalorder %s42, %s43
      %p57 = scmp.eq.s32.totalorder %s21, 1
      %p58 = por %p56, %p57
      %p60 = scmp.ne.s32.totalorder %s43, %s59
      %p61 = scmp.eq.s32.totalorder %s21, 0
      %p62 = por %p60, %p61
      %s63 = ssub.s32 %s22, %s34
      %s64 = ssub.s32 %s23, %s30
      %s65 = sor.u32 %s63, %s64
      %p66 = scmp.eq.s32.totalorder %s65, 0
      %s68 = sadd.s32 %s67, 1
      %s69 = scalar_select %p66, %s67, %s68
      %p72 = pneg %p66
      %p73 = scmp.eq.s32.totalorder %s15, 1
      %p74 = por %p72, %p73
      %p75 = scmp.ne.s32.totalorder %s67, %s70
      %p76 = scmp.eq.s32.totalorder %s15, 0
      %p77 = por %p75, %p76
      %p78 = scmp.ne.s32.totalorder %s67, %s70
      %p79 = scmp.eq.s32.totalorder %s20, 1
      %p80 = por %p78, %p79
      %p81 = scmp.ne.s32.totalorder %s70, %s71
      %p82 = scmp.eq.s32.totalorder %s20, 0
      %p83 = por %p81, %p82
      %p84 = scmp.ne.s32.totalorder %s70, %s71
      %p85 = scmp.eq.s32.totalorder %s21, 1
      %p86 = por %p84, %p85
      %p88 = scmp.ne.s32.totalorder %s71, %s87
      %p89 = scmp.eq.s32.totalorder %s21, 0
      %p90 = por %p88, %p89
      %s92 = sadd.s32 %s91, 1
      %p95 = scmp.eq.s32.totalorder %s15, 1
      %p96 = scmp.ne.s32.totalorder %s91, %s93
      %p97 = scmp.eq.s32.totalorder %s15, 0
      %p98 = por %p96, %p97
      %p99 = scmp.ne.s32.totalorder %s91, %s93
      %p100 = scmp.eq.s32.totalorder %s20, 1
      %p101 = por %p99, %p100
      %p102 = scmp.ne.s32.totalorder %s93, %s94
      %p103 = scmp.eq.s32.totalorder %s20, 0
      %p104 = por %p102, %p103
      %p105 = scmp.ne.s32.totalorder %s93, %s94
      %p106 = scmp.eq.s32.totalorder %s21, 1
      %p107 = por %p105, %p106
      %p109 = scmp.ne.s32.totalorder %s94, %s108
      %p110 = scmp.eq.s32.totalorder %s21, 0
      %p111 = por %p109, %p110
      %p112 = scmp.le.s32.totalorder 1, %s15
      %p113 = scmp.lt.s32.totalorder %s15, 3
      %p114 = pnand %p112, %p113
      %p115 = pneg %p114
      // Predicated region
      $region9: #{tpu_custom_call.1} parent=5 // pred_check
        _
      $region10: #{tpu_custom_call.1} parent=5 // pred_check_branch
        %117 = sbr.rel (%p114) target = $region12
      $region11: #{tpu_custom_call.1} parent=5 // pred_region
        %s118 = ssub.s32 %s15, 1
      $region12: #{tpu_custom_call.1} parent=5 // pred_fallthru
        _
      %p119 = scmp.lt.s32.totalorder %s15, 2
      // Predicated region
      $region13: #{tpu_custom_call.1} parent=5 // pred_check
        %p120 = pneg %p119
      $region14: #{tpu_custom_call.1} parent=5 // pred_check_branch
        %122 = sbr.rel (%p120) target = $region16
      $region15: #{tpu_custom_call.1} parent=5 // pred_region
        // Predicated region
        $region17: #{tpu_custom_call.1} parent=15 // pred_check
          %p123 = pneg %p49
        $region18: #{tpu_custom_call.1} parent=15 // pred_check_branch
          %125 = sbr.rel (%p123) target = $region20
        $region19: #{tpu_custom_call.1} parent=15 // pred_region
          %s126 = sand.u32 %s39, 1
          %s127 = scalar_lea.sflag [#allocation6], %s126
          %s128 = sand.u32 %s39, 1
          %s129 = smul.addr %s128, 32
          %s130 = scalar_lea.vmem [#allocation5], %s129
          %132 = vsyncadd %s127, 0
          %s133 = smul.addr %s22, 4
          %s134 = sadd.s32 %s23, %s133
          %s135 = smul.addr %s134, 8
          %s136 = scalar_lea.hbm %s0, %s135
          %s137 = sshll.u32 %s136, 4
          %s138 = int_to_ptr.hbm [resolvable:$true] %s137
          %s139 = sshll.u32 %s130, 4
          %s140 = int_to_ptr.vmem [resolvable:$true] %s139
          %145 = dma.hbm_to_vmem [thread:$0]  %s138, 512, %s140, %s127, 128, 128, 8
        $region20: #{tpu_custom_call.1} parent=15 // pred_fallthru
          _
        // Predicated region
        $region21: #{tpu_custom_call.1} parent=15 // pred_check
          %p146 = pneg %p77
        $region22: #{tpu_custom_call.1} parent=15 // pred_check_branch
          %148 = sbr.rel (%p146) target = $region24
        $region23: #{tpu_custom_call.1} parent=15 // pred_region
          %s149 = sand.u32 %s67, 1
          %s150 = scalar_lea.sflag [#allocation9], %s149
          %s151 = sand.u32 %s67, 1
          %s152 = smul.addr %s151, 8
          %s153 = scalar_lea.vmem [#allocation8], %s152
          %155 = vsyncadd %s150, 0
          %s156 = sadd.s32 %s23, %s22
          %s157 = smul.addr %s156, 8
          %s158 = scalar_lea.hbm %s1, %s157
          %s160 = sshll.u32 %s158, 4
          %s161 = int_to_ptr.hbm [resolvable:$true] %s160
          %s162 = sshll.u32 %s153, 4
          %s163 = int_to_ptr.vmem [resolvable:$true] %s162
          %165 = dma.hbm_to_vmem [thread:$0]  %s161, 128, %s163, %s150
        $region24: #{tpu_custom_call.1} parent=15 // pred_fallthru
          _
      $region16: #{tpu_custom_call.1} parent=5 // pred_fallthru
        _
      %p166 = scmp.le.s32.totalorder 1, %s15
      %p167 = scmp.lt.s32.totalorder %s15, 3
      %p168 = pnand %p166, %p167
      %p169 = pneg %p168
      // Predicated region
      $region25: #{tpu_custom_call.1} parent=5 // pred_check
        _
      $region26: #{tpu_custom_call.1} parent=5 // pred_check_branch
        %171 = sbr.rel (%p168) target = $region28
      $region27: #{tpu_custom_call.1} parent=5 // pred_region
        %s172 = ssub.s32 %s15, 1
        %s173 = sand.u32 %s42, 1
        %s174 = scalar_lea.sflag [#allocation6], %s173
        %s175 = sand.u32 %s42, 1
        %s176 = smul.addr %s175, 32
        %s177 = scalar_lea.vmem [#allocation5], %s176
        // Predicated region
        $region29: #{tpu_custom_call.1} parent=27 // pred_check
          %p178 = pneg %p55
        $region30: #{tpu_custom_call.1} parent=27 // pred_check_branch
          %180 = sbr.rel (%p178) target = $region32
        $region31: #{tpu_custom_call.1} parent=27 // pred_region
          %182 = dma.done %s174, 512
        $region32: #{tpu_custom_call.1} parent=27 // pred_fallthru
          _
        %s183 = sand.u32 %s70, 1
        %s184 = scalar_lea.sflag [#allocation9], %s183
        %s185 = sand.u32 %s70, 1
        %s186 = smul.addr %s185, 8
        %s187 = scalar_lea.vmem [#allocation8], %s186
        // Predicated region
        $region33: #{tpu_custom_call.1} parent=27 // pred_check
          %p188 = pneg %p83
        $region34: #{tpu_custom_call.1} parent=27 // pred_check_branch
          %190 = sbr.rel (%p188) target = $region36
        $region35: #{tpu_custom_call.1} parent=27 // pred_region
          %192 = dma.done %s184, 128
        $region36: #{tpu_custom_call.1} parent=27 // pred_fallthru
          _
        %s193 = sand.u32 %s42, 1
        %s194 = scalar_lea.sflag [#allocation6], %s193
        %s195 = sand.u32 %s42, 1
        %s196 = smul.addr %s195, 32
        %s197 = scalar_lea.vmem [#allocation5], %s196
        %p198 = pneg %p55
        %p199 = pneg %p52
        %s200 = sand.u32 %s70, 1
        %s201 = scalar_lea.sflag [#allocation9], %s200
        %s202 = sand.u32 %s70, 1
        %s203 = smul.addr %s202, 8
        %s204 = scalar_lea.vmem [#allocation8], %s203
        %p205 = pneg %p83
        %p206 = pneg %p80
        %p207 = pneg %p104
        %p208 = pneg %p101
        %p209 = scmp.eq.s32.totalorder %s24, 0
        %p210 = scmp.eq.s32.totalorder %s25, 0
        %p211 = pnand %p209, %p210
        %p212 = pneg %p211
        // Predicated region
        $region37: #{tpu_custom_call.1} parent=27 // pred_check
          _
        $region38: #{tpu_custom_call.1} parent=27 // pred_check_branch
          %214 = sbr.rel (%p211) target = $region40
        $region39: #{tpu_custom_call.1} parent=27 // pred_region
          %215 = vst [vmem:[#allocation2] sm:$0xff] 0.0
          %216 = vst [vmem:[#allocation2 + $0x8] sm:$0xff] 0.0
          %217 = vst [vmem:[#allocation2 + $0x10] sm:$0xff] 0.0
          %218 = vst [vmem:[#allocation2 + $0x18] sm:$0xff] 0.0
          %219 = vst [vmem:[#allocation3] sm:$0xff] 0.0
          %220 = vst [vmem:[#allocation3 + $0x8] sm:$0xff] 0.0
          %221 = vst [vmem:[#allocation3 + $0x10] sm:$0xff] 0.0
          %222 = vst [vmem:[#allocation3 + $0x18] sm:$0xff] 0.0
          %223 = vst [vmem:[#allocation4] sm:$0xff] 0.0
          %224 = vst [vmem:[#allocation4 + $0x8] sm:$0xff] 0.0
          %225 = vst [vmem:[#allocation4 + $0x10] sm:$0xff] 0.0
          %226 = vst [vmem:[#allocation4 + $0x18] sm:$0xff] 0.0
        $region40: #{tpu_custom_call.1} parent=27 // pred_fallthru
          _
        %v227 = vld [vmem:[%s177] sm:$0xff]
        %v228 = vld [vmem:[%s177 + $0x8] sm:$0xff]
        %v229 = vld [vmem:[%s177 + $0x10] sm:$0xff]
        %v230 = vld [vmem:[%s177 + $0x18] sm:$0xff]
        %v231 = vmax.f32 %v227, %v228
        %v232 = vmax.f32 %v229, %v230
        %v233 = vmax.f32 %v231, %v232
        %v234 = vsub.f32 %v227, %v233
        %v235 = vsub.f32 %v228, %v233
        %v236 = vsub.f32 %v229, %v233
        %v237 = vsub.f32 %v230, %v233
        %v238 = vmul.f32 %v234, 1.442695
        %v239 = vpow.pop %v238
        %v240 = vmul.f32 %v235, 1.442695
        %v241 = vpow.pop %v240
        %v242 = vmul.f32 %v236, 1.442695
        %v243 = vpow.pop %v242
        %v244 = vmul.f32 %v237, 1.442695
        %v245 = vpow.pop %v244
        %v246 = vadd.f32 %v239, %v241
        %v247 = vadd.f32 %v246, %v243
        %v248 = vadd.f32 %v247, %v245
        %v249 = vrcp.pop %v248
        %v250 = vld [vmem:[%s187] sm:$0xff]
        %vm251 = vcmp.ne.s32.totalorder %v250, 255
        %v252 = vsel %vm251, 1, 0
        %v253 = vcvt.s32.f32 %v252
        %v254 = vmul.f32 %v249, %v253
        %v255 = vmul.f32 %v239, %v254
        %vm256 = vcmp.eq.s32.totalorder %v250, 0
        %v257 = vsel %vm256, 1, 0
        %v258 = vcvt.s32.f32 %v257
        %v259 = vld [vmem:[#allocation2] sm:$0xff]
        %v260 = vmul.f32 %v255, %v258
        %v261 = vadd.f32 %v260, 0.0
        %v262 = vadd.f32 %v259, %v261
        %263 = vst [vmem:[#allocation2] sm:$0xff] %v262
        %v264 = vld [vmem:[#allocation3] sm:$0xff]
        %v265 = vadd.f32 %v255, 0.0
        %v266 = vadd.f32 %v264, %v265
        %267 = vst [vmem:[#allocation3] sm:$0xff] %v266
        %v268 = vld [vmem:[#allocation4] sm:$0xff]
        %v269 = vadd.f32 %v258, 0.0
        %v270 = vadd.f32 %v268, %v269
        %271 = vst [vmem:[#allocation4] sm:$0xff] %v270
        %v272 = vmul.f32 %v241, %v254
        %vm273 = vcmp.eq.s32.totalorder %v250, 1
        %v274 = vsel %vm273, 1, 0
        %v275 = vcvt.s32.f32 %v274
        %s276 = scalar_lea.vmem [#allocation2], 8
        %v277 = vld [vmem:[%s276] sm:$0xff]
        %v278 = vmul.f32 %v272, %v275
        %v279 = vadd.f32 %v278, 0.0
        %v280 = vadd.f32 %v277, %v279
        %281 = vst [vmem:[%s276] sm:$0xff] %v280
        %s282 = scalar_lea.vmem [#allocation3], 8
        %v283 = vld [vmem:[%s282] sm:$0xff]
        %v284 = vadd.f32 %v272, 0.0
        %v285 = vadd.f32 %v283, %v284
        %286 = vst [vmem:[%s282] sm:$0xff] %v285
        %s287 = scalar_lea.vmem [#allocation4], 8
        %v288 = vld [vmem:[%s287] sm:$0xff]
        %v289 = vadd.f32 %v275, 0.0
        %v290 = vadd.f32 %v288, %v289
        %291 = vst [vmem:[%s287] sm:$0xff] %v290
        %v292 = vmul.f32 %v243, %v254
        %vm293 = vcmp.eq.s32.totalorder %v250, 2
        %v294 = vsel %vm293, 1, 0
        %v295 = vcvt.s32.f32 %v294
        %s296 = scalar_lea.vmem [#allocation2], 16
        %v297 = vld [vmem:[%s296] sm:$0xff]
        %v298 = vmul.f32 %v292, %v295
        %v299 = vadd.f32 %v298, 0.0
        %v300 = vadd.f32 %v297, %v299
        %301 = vst [vmem:[%s296] sm:$0xff] %v300
        %s302 = scalar_lea.vmem [#allocation3], 16
        %v303 = vld [vmem:[%s302] sm:$0xff]
        %v304 = vadd.f32 %v292, 0.0
        %v305 = vadd.f32 %v303, %v304
        %306 = vst [vmem:[%s302] sm:$0xff] %v305
        %s307 = scalar_lea.vmem [#allocation4], 16
        %v308 = vld [vmem:[%s307] sm:$0xff]
        %v309 = vadd.f32 %v295, 0.0
        %v310 = vadd.f32 %v308, %v309
        %311 = vst [vmem:[%s307] sm:$0xff] %v310
        %v312 = vmul.f32 %v245, %v254
        %vm313 = vcmp.eq.s32.totalorder %v250, 3
        %v314 = vsel %vm313, 1, 0
        %v315 = vcvt.s32.f32 %v314
        %s316 = scalar_lea.vmem [#allocation2], 24
        %v317 = vld [vmem:[%s316] sm:$0xff]
        %v318 = vmul.f32 %v312, %v315
        %v319 = vadd.f32 %v318, 0.0
        %v320 = vadd.f32 %v317, %v319
        %321 = vst [vmem:[%s316] sm:$0xff] %v320
        %s322 = scalar_lea.vmem [#allocation3], 24
        %v323 = vld [vmem:[%s322] sm:$0xff]
        %v324 = vadd.f32 %v312, 0.0
        %v325 = vadd.f32 %v323, %v324
        %326 = vst [vmem:[%s322] sm:$0xff] %v325
        %s327 = scalar_lea.vmem [#allocation4], 24
        %v328 = vld [vmem:[%s327] sm:$0xff]
        %v329 = vadd.f32 %v315, 0.0
        %v330 = vadd.f32 %v328, %v329
        %331 = vst [vmem:[%s327] sm:$0xff] %v330
        %p332 = scmp.eq.s32.totalorder %s24, 1
        %p333 = pnand %p332, %p210
        %p334 = pneg %p333
        // Predicated region
        $region41: #{tpu_custom_call.1} parent=27 // pred_check
          _
        $region42: #{tpu_custom_call.1} parent=27 // pred_check_branch
          %336 = sbr.rel (%p333) target = $region44
        $region43: #{tpu_custom_call.1} parent=27 // pred_region
          %v337 = vld [vmem:[#allocation2] sm:$0xff]
          %338 = vadd.xlane.f32.xlu0 %v337
          %v339 = vpop.xlane.xlu0 %338
          %v340 = vrot.slane %v339, 4
          %v341 = vadd.f32 %v339, %v340
          %v342 = vrot.slane %v341, 2
          %v343 = vadd.f32 %v341, %v342
          %v344 = vrot.slane %v343, 1
          %v345 = vadd.f32 %v343, %v344
          %s346 = vtos %v345
          %v347 = vld [vmem:[#allocation3] sm:$0xff]
          %348 = vadd.xlane.f32.xlu0 %v347
          %v349 = vpop.xlane.xlu0 %348
          %v350 = vrot.slane %v349, 4
          %v351 = vadd.f32 %v349, %v350
          %v352 = vrot.slane %v351, 2
          %v353 = vadd.f32 %v351, %v352
          %v354 = vrot.slane %v353, 1
          %v355 = vadd.f32 %v353, %v354
          %s356 = vtos %v355
          %v357 = vld [vmem:[#allocation4] sm:$0xff]
          %358 = vadd.xlane.f32.xlu0 %v357
          %v359 = vpop.xlane.xlu0 %358
          %v360 = vrot.slane %v359, 4
          %v361 = vadd.f32 %v359, %v360
          %v362 = vrot.slane %v361, 2
          %v363 = vadd.f32 %v361, %v362
          %v364 = vrot.slane %v363, 1
          %v365 = vadd.f32 %v363, %v364
          %s366 = vtos %v365
          %s367 = sadd.f32 %s356, %s366
          %s368 = smul.f32 %s346, 2.0
          %s369 = sadd.f32 %s368, 1e-06
          %s370 = sadd.f32 %s367, 1e-06
          %v371 = vstv %s370
          %v372 = vrcp.pop %v371
          %v373 = vmul.f32 %v371, %v372
          %v374 = vsub.f32 1.0, %v373
          %v375 = vmul.f32 %v372, %v374
          %v376 = vadd.f32 %v372, %v375
          %vm377 = vweird.f32 %v371
          %vm378 = vweird.f32 %v372
          %vm379 = vmor %vm377, %vm378
          %v380 = vsel %vm379, %v372, %v376
          %v381 = vand.u32 2147483647, %v371
          %vm382 = vcmp.eq.f32.partialorder %v381, 8.507059e+37
          %v383 = vand.u32 %v371, 2147483648
          %v384 = vor.u32 1.1754944e-38, %v383
          %v385 = vsel %vm382, %v384, %v380
          %s386 = vtos %v385
          %s387 = smul.f32 %s369, %s386
          %s388 = sadd.f32 %s387, 0.0
          %v389 = vld [vmem:[%s276] sm:$0xff]
          %390 = vadd.xlane.f32.xlu0 %v389
          %v391 = vpop.xlane.xlu0 %390
          %v392 = vrot.slane %v391, 4
          %v393 = vadd.f32 %v391, %v392
          %v394 = vrot.slane %v393, 2
          %v395 = vadd.f32 %v393, %v394
          %v396 = vrot.slane %v395, 1
          %v397 = vadd.f32 %v395, %v396
          %s398 = vtos %v397
          %v399 = vld [vmem:[%s282] sm:$0xff]
          %400 = vadd.xlane.f32.xlu0 %v399
          %v401 = vpop.xlane.xlu0 %400
          %v402 = vrot.slane %v401, 4
          %v403 = vadd.f32 %v401, %v402
          %v404 = vrot.slane %v403, 2
          %v405 = vadd.f32 %v403, %v404
          %v406 = vrot.slane %v405, 1
          %v407 = vadd.f32 %v405, %v406
          %s408 = vtos %v407
          %v409 = vld [vmem:[%s287] sm:$0xff]
          %410 = vadd.xlane.f32.xlu0 %v409
          %v411 = vpop.xlane.xlu0 %410
          %v412 = vrot.slane %v411, 4
          %v413 = vadd.f32 %v411, %v412
          %v414 = vrot.slane %v413, 2
          %v415 = vadd.f32 %v413, %v414
          %v416 = vrot.slane %v415, 1
          %v417 = vadd.f32 %v415, %v416
          %s418 = vtos %v417
          %s419 = sadd.f32 %s408, %s418
          %s420 = smul.f32 %s398, 2.0
          %s421 = sadd.f32 %s420, 1e-06
          %s422 = sadd.f32 %s419, 1e-06
          %v423 = vstv %s422
          %v424 = vrcp.pop %v423
          %v425 = vmul.f32 %v423, %v424
          %v426 = vsub.f32 1.0, %v425
          %v427 = vmul.f32 %v424, %v426
          %v428 = vadd.f32 %v424, %v427
          %vm429 = vweird.f32 %v423
          %vm430 = vweird.f32 %v424
          %vm431 = vmor %vm429, %vm430
          %v432 = vsel %vm431, %v424, %v428
          %v433 = vand.u32 2147483647, %v423
          %vm434 = vcmp.eq.f32.partialorder %v433, 8.507059e+37
          %v435 = vand.u32 %v423, 2147483648
          %v436 = vor.u32 1.1754944e-38, %v435
          %v437 = vsel %vm434, %v436, %v432
          %s438 = vtos %v437
          %s439 = smul.f32 %s421, %s438
          %s440 = sadd.f32 %s388, %s439
          %v441 = vld [vmem:[%s296] sm:$0xff]
          %442 = vadd.xlane.f32.xlu0 %v441
          %v443 = vpop.xlane.xlu0 %442
          %v444 = vrot.slane %v443, 4
          %v445 = vadd.f32 %v443, %v444
          %v446 = vrot.slane %v445, 2
          %v447 = vadd.f32 %v445, %v446
          %v448 = vrot.slane %v447, 1
          %v449 = vadd.f32 %v447, %v448
          %s450 = vtos %v449
          %v451 = vld [vmem:[%s302] sm:$0xff]
          %452 = vadd.xlane.f32.xlu0 %v451
          %v453 = vpop.xlane.xlu0 %452
          %v454 = vrot.slane %v453, 4
          %v455 = vadd.f32 %v453, %v454
          %v456 = vrot.slane %v455, 2
          %v457 = vadd.f32 %v455, %v456
          %v458 = vrot.slane %v457, 1
          %v459 = vadd.f32 %v457, %v458
          %s460 = vtos %v459
          %v461 = vld [vmem:[%s307] sm:$0xff]
          %462 = vadd.xlane.f32.xlu0 %v461
          %v463 = vpop.xlane.xlu0 %462
          %v464 = vrot.slane %v463, 4
          %v465 = vadd.f32 %v463, %v464
          %v466 = vrot.slane %v465, 2
          %v467 = vadd.f32 %v465, %v466
          %v468 = vrot.slane %v467, 1
          %v469 = vadd.f32 %v467, %v468
          %s470 = vtos %v469
          %s471 = sadd.f32 %s460, %s470
          %s472 = smul.f32 %s450, 2.0
          %s473 = sadd.f32 %s472, 1e-06
          %s474 = sadd.f32 %s471, 1e-06
          %v475 = vstv %s474
          %v476 = vrcp.pop %v475
          %v477 = vmul.f32 %v475, %v476
          %v478 = vsub.f32 1.0, %v477
          %v479 = vmul.f32 %v476, %v478
          %v480 = vadd.f32 %v476, %v479
          %vm481 = vweird.f32 %v475
          %vm482 = vweird.f32 %v476
          %vm483 = vmor %vm481, %vm482
          %v484 = vsel %vm483, %v476, %v480
          %v485 = vand.u32 2147483647, %v475
          %vm486 = vcmp.eq.f32.partialorder %v485, 8.507059e+37
          %v487 = vand.u32 %v475, 2147483648
          %v488 = vor.u32 1.1754944e-38, %v487
          %v489 = vsel %vm486, %v488, %v484
          %s490 = vtos %v489
          %s491 = smul.f32 %s473, %s490
          %s492 = sadd.f32 %s440, %s491
          %v493 = vld [vmem:[%s316] sm:$0xff]
          %494 = vadd.xlane.f32.xlu0 %v493
          %v495 = vpop.xlane.xlu0 %494
          %v496 = vrot.slane %v495, 4
          %v497 = vadd.f32 %v495, %v496
          %v498 = vrot.slane %v497, 2
          %v499 = vadd.f32 %v497, %v498
          %v500 = vrot.slane %v499, 1
          %v501 = vadd.f32 %v499, %v500
          %s502 = vtos %v501
          %v503 = vld [vmem:[%s322] sm:$0xff]
          %504 = vadd.xlane.f32.xlu0 %v503
          %v505 = vpop.xlane.xlu0 %504
          %v506 = vrot.slane %v505, 4
          %v507 = vadd.f32 %v505, %v506
          %v508 = vrot.slane %v507, 2
          %v509 = vadd.f32 %v507, %v508
          %v510 = vrot.slane %v509, 1
          %v511 = vadd.f32 %v509, %v510
          %s512 = vtos %v511
          %v513 = vld [vmem:[%s327] sm:$0xff]
          %514 = vadd.xlane.f32.xlu0 %v513
          %v515 = vpop.xlane.xlu0 %514
          %v516 = vrot.slane %v515, 4
          %v517 = vadd.f32 %v515, %v516
          %v518 = vrot.slane %v517, 2
          %v519 = vadd.f32 %v517, %v518
          %v520 = vrot.slane %v519, 1
          %v521 = vadd.f32 %v519, %v520
          %s522 = vtos %v521
          %s523 = sadd.f32 %s512, %s522
          %s524 = smul.f32 %s502, 2.0
          %s525 = sadd.f32 %s524, 1e-06
          %s526 = sadd.f32 %s523, 1e-06
          %v527 = vstv %s526
          %v528 = vrcp.pop %v527
          %v529 = vmul.f32 %v527, %v528
          %v530 = vsub.f32 1.0, %v529
          %v531 = vmul.f32 %v528, %v530
          %v532 = vadd.f32 %v528, %v531
          %vm533 = vweird.f32 %v527
          %vm534 = vweird.f32 %v528
          %vm535 = vmor %vm533, %vm534
          %v536 = vsel %vm535, %v528, %v532
          %v537 = vand.u32 2147483647, %v527
          %vm538 = vcmp.eq.f32.partialorder %v537, 8.507059e+37
          %v539 = vand.u32 %v527, 2147483648
          %v540 = vor.u32 1.1754944e-38, %v539
          %v541 = vsel %vm538, %v540, %v536
          %s542 = vtos %v541
          %s543 = smul.f32 %s525, %s542
          %s544 = sadd.f32 %s492, %s543
          %v545 = vrcp.pop 4.0
          %v546 = vmul.f32 4.0, %v545
          %v547 = vsub.f32 1.0, %v546
          %v548 = vmul.f32 %v545, %v547
          %v549 = vadd.f32 %v545, %v548
          %vm550 = vweird.f32 %v545
          %v551 = vsel %vm550, %v545, %v549
          %s552 = vtos %v551
          %s553 = smul.f32 %s544, %s552
          %s554 = ssub.f32 1.0, %s553
          %v555 = vstv %s554
          %vm556 = vcmask 0
          %557 = vst.msk [vmem:[#allocation10] sm:$0x1] %vm556, %v555
        $region44: #{tpu_custom_call.1} parent=27 // pred_fallthru
          _
        // Predicated region
        $region45: #{tpu_custom_call.1} parent=27 // pred_check
          %p558 = pneg %p101
        $region46: #{tpu_custom_call.1} parent=27 // pred_check_branch
          %560 = sbr.rel (%p558) target = $region48
        $region47: #{tpu_custom_call.1} parent=27 // pred_region
          %562 = vsyncadd [#allocation7], 0
          %s564 = sshll.u32 [#allocation10], 4
          %s565 = int_to_ptr.vmem [resolvable:$true] %s564
          %s566 = sshll.u32 %s2, 4
          %s567 = int_to_ptr.hbm [resolvable:$true] %s566
          %569 = dma.vmem_to_hbm [thread:$0]  %s565, 16, %s567, [#allocation7]
        $region48: #{tpu_custom_call.1} parent=27 // pred_fallthru
          _
        // Predicated region
        $region49: #{tpu_custom_call.1} parent=27 // pred_check
          %p570 = pneg %p101
        $region50: #{tpu_custom_call.1} parent=27 // pred_check_branch
          %572 = sbr.rel (%p570) target = $region52
        $region51: #{tpu_custom_call.1} parent=27 // pred_region
          %574 = dma.done [#allocation7], 16
        $region52: #{tpu_custom_call.1} parent=27 // pred_fallthru
          _
      $region28: #{tpu_custom_call.1} parent=5 // pred_fallthru
        _
      %p575 = scmp.le.s32.totalorder 2, %s15
      // Predicated region
      $region53: #{tpu_custom_call.1} parent=5 // pred_check
        %p576 = pneg %p575
      $region54: #{tpu_custom_call.1} parent=5 // pred_check_branch
        %578 = sbr.rel (%p576) target = $region56
      $region55: #{tpu_custom_call.1} parent=5 // pred_region
        %s579 = ssub.s32 %s15, 2
      $region56: #{tpu_custom_call.1} parent=5 // pred_fallthru
        _
    $region6: #{tpu_custom_call.1} parent=1 // loop_footer
      %s19 = sadd.s32 1, %s15
    $region7: #{tpu_custom_call.1} parent=1 // loop_footer_branch
      %14 = sbr.rel target = $region3
    $region8: #{tpu_custom_call.1} parent=1 // loop_exit
      _
    %580 = vsyncpa [#allocation6], 1
    %s581 = scalar_lea.sflag [#allocation6], 1
    %582 = vsyncpa %s581, 1
    %583 = vsyncpa [#allocation9], 1
    %s584 = scalar_lea.sflag [#allocation9], 1
    %585 = vsyncpa %s584, 1
    %586 = vsyncpa [#allocation7], 1
    %s587 = scalar_lea.sflag [#allocation7], 1
    %588 = vsyncpa %s587, 1

</llo_original>
